<compile_context>
chip_gen: v5e
topology: v5e:2x2
jax: 0.10.0
libtpu: 0.0.40
codegen_flags: <defaults>
</compile_context>

<pallas_src>
import jax
import jax.numpy as jnp
from jax.experimental import pallas as pl
from jax.experimental.pallas import tpu as pltpu


def _round_up(x, m):
    return ((x + m - 1) // m) * m


# ----------------------------------------------------------------------------
# Parameter packing: bf16 weight buffer + f32 small-params buffer (resident).
# ----------------------------------------------------------------------------
def pack_params(params, spatial_out_channels, temporal_out_channels):
    """Pack (w1s, w1t, b1, w2, b2, w3, b3) into (bf16 weights, f32 smalls)."""
    w1s, w1t, b1, w2, b2, w3, b3 = params
    cs, ct = spatial_out_channels, temporal_out_channels
    cin = cs + ct
    r2 = _round_up(cin, 16)                    # bf16 sublane-packing alignment

    # bf16 weights: rows [0, cin) = W1 (cin, 128); rows [r2, r2+64) = W2^T.
    w_buf = jnp.zeros((r2 + 64, 128), jnp.bfloat16)
    w1 = jnp.concatenate([w1s, w1t], axis=0)                  # (cin, 128)
    w_buf = w_buf.at[0:cin, :].set(w1.astype(jnp.bfloat16))
    w_buf = w_buf.at[r2:r2 + 64, :].set(w2.T.astype(jnp.bfloat16))

    # f32 smalls: rows [0,64) col0 = b2 (column), col1 = w3 (column),
    #             (0,2) = b3, row 64 = b1 (full 128-lane row).
    f_buf = jnp.zeros((72, 128), jnp.float32)
    f_buf = f_buf.at[0:64, 0].set(b2.astype(jnp.float32))
    f_buf = f_buf.at[0:64, 1].set(w3[:, 0].astype(jnp.float32))
    f_buf = f_buf.at[0, 2].set(b3[0].astype(jnp.float32))
    f_buf = f_buf.at[64, :].set(b1.astype(jnp.float32))
    return w_buf, f_buf


# ----------------------------------------------------------------------------
# Kernel
# ----------------------------------------------------------------------------
def _make_kernel(cs, ct):
    cin = cs + ct
    r2 = _round_up(cin, 16)

    def kernel(s_ref, t_ref, w_ref, f_ref, o_ref):
        f32, bf16 = jnp.float32, jnp.bfloat16
        tb = s_ref.shape[0]

        # ---- fc1: fused concat (single K=cin dot), in-kernel f32->bf16 cast.
        x = jnp.concatenate([s_ref[...], t_ref[...]], axis=-1).astype(bf16)
        w1 = w_ref[0:cin, :]                       # (cin, 128) bf16 (pre-packed)
        b1 = f_ref[64:65, :]                       # (1, 128)   f32
        h1 = jnp.dot(x, w1, preferred_element_type=f32) + b1
        h1 = jnp.maximum(h1, 0.0)                  # (tb, 128) f32

        # Switch to batch-in-lanes: one canonical (tb,128)->(128,tb) transpose
        # (rides the otherwise-idle XLU) so everything downstream, including
        # the output store, is lane dense.
        h1t = h1.T.astype(bf16)                    # (128, tb) bf16

        # ---- fc2 (transposed): h2^T = W2^T @ h1^T
        w2t = w_ref[r2:r2 + 64, :]                 # (64, 128) bf16
        b2c = f_ref[0:64, 0:1]                     # (64, 1)   f32
        h2t = jnp.dot(w2t, h1t, preferred_element_type=f32) + b2c
        h2t = jnp.maximum(h2t, 0.0)                # (64, tb) f32

        # ---- fc_out: N=1 -> VPU multiply + sublane reduce -> lane-dense row.
        w3c = f_ref[0:64, 1:2]                     # (64, 1) f32
        b3 = f_ref[0:1, 2:3]                       # (1, 1)  f32
        out = jnp.sum(h2t * w3c, axis=0, keepdims=True) + b3   # (1, tb)
        o_ref[...] = out.reshape(1, 1, tb).astype(o_ref.dtype)

    return kernel


# ----------------------------------------------------------------------------
# Wrapper
# ----------------------------------------------------------------------------
def cross_layer_interaction(spatial_output, temporal_output, w_packed, f_packed,
                            *, tile_b=4096):
    """Fused MLP forward. spatial_output: (B, Cs), temporal_output: (B, Ct)."""
    B, cs = spatial_output.shape
    ct = temporal_output.shape[-1]
    cin = cs + ct

    # Batch tile: multiple of 128; never taller than needed; keep >= 2 tiles
    # when B is large so the "parallel" axis can use both v7x TensorCores.
    tile_b = max(128, _round_up(int(tile_b), 128))
    tile_b = min(tile_b, _round_up(B, 128))
    if B > 256:
        tile_b = min(tile_b, max(128, _round_up(pl.cdiv(B, 2), 128)))

    s_in, t_in = spatial_output, temporal_output
    if B < tile_b:                      # tiny batch: pad up to one full tile
        pad = tile_b - B
        s_in = jnp.pad(s_in, ((0, pad), (0, 0)))
        t_in = jnp.pad(t_in, ((0, pad), (0, 0)))
    rows = s_in.shape[0]
    n_blk = pl.cdiv(rows, tile_b)

    kernel = _make_kernel(cs, ct)
    cost = pl.CostEstimate(
        flops=2 * B * (cin * 128 + 128 * 64 + 64),
        transcendentals=0,
        bytes_accessed=(B * cin * 4                 # f32 activation reads
                        + B * 4                     # f32 output writes
                        + int(w_packed.size) * 2    # bf16 weights (once)
                        + int(f_packed.size) * 4),  # f32 smalls  (once)
    )

    out = pl.pallas_call(
        kernel,
        out_shape=jax.ShapeDtypeStruct((n_blk, 1, tile_b), jnp.float32),
        grid=(n_blk,),
        in_specs=[
            pl.BlockSpec((tile_b, cs), lambda i: (i, 0)),
            pl.BlockSpec((tile_b, ct), lambda i: (i, 0)),
            # constant index_maps -> params DMA'd once, resident in VMEM
            pl.BlockSpec(w_packed.shape, lambda i: (0, 0)),
            pl.BlockSpec(f_packed.shape, lambda i: (0, 0)),
        ],
        out_specs=pl.BlockSpec((1, 1, tile_b), lambda i: (i, 0, 0)),
        compiler_params=pltpu.CompilerParams(
            dimension_semantics=("parallel",),
            vmem_limit_bytes=32 * 1024 * 1024),
        cost_estimate=cost,
    )(s_in, t_in, w_packed, f_packed)

    return out.reshape(n_blk * tile_b, 1)[:B]


# ----------------------------------------------------------------------------
# Init + pure-JAX reference
# ----------------------------------------------------------------------------
def init_params(key, spatial_out_channels, temporal_out_channels):
    """Deterministic init mimicking nn.Linear's uniform(-1/sqrt(fan_in), +)."""
    d_in = spatial_out_channels + temporal_out_channels
    k = jax.random.split(key, 6)

    def uinit(kk, shape, fan_in):
        bound = 1.0 / jnp.sqrt(fan_in)
        return jax.random.uniform(kk, shape, jnp.float32, -bound, bound)

    # weights stored (in, out)
    w1 = uinit(k[0], (d_in, 128), d_in)
    b1 = uinit(k[1], (128,), d_in)
    w2 = uinit(k[2], (128, 64), 128)
    b2 = uinit(k[3], (64,), 128)
    w3 = uinit(k[4], (64, 1), 64)
    b3 = uinit(k[5], (1,), 64)

    w1s = w1[:spatial_out_channels]
    w1t = w1[spatial_out_channels:]
    return (w1s, w1t, b1, w2, b2, w3, b3)


def reference(spatial_output, temporal_output, params):
    w1s, w1t, b1, w2, b2, w3, b3 = params
    w1 = jnp.concatenate([w1s, w1t], axis=0)
    x = jnp.concatenate([spatial_output, temporal_output], axis=-1)
    x = jax.nn.relu(x @ w1 + b1)
    x = jax.nn.relu(x @ w2 + b2)
    return x @ w3 + b3


# ----------------------------------------------------------------------------
# Demo / self-test
# ----------------------------------------------------------------------------
if __name__ == "__main__":
    spatial_out_channels = 16
    temporal_out_channels = 16

    key = jax.random.PRNGKey(0)
    k_s, k_t, k_p, k_s2, k_t2 = jax.random.split(key, 5)

    params = init_params(k_p, spatial_out_channels, temporal_out_channels)
    w_packed, f_packed = pack_params(params, spatial_out_channels,
                                     temporal_out_channels)

    # --- small case (single padded tile) ---
    batch = 8
    spatial_output = jax.random.normal(k_s, (batch, spatial_out_channels),
                                       jnp.float32)
    temporal_output = jax.random.normal(k_t, (batch, temporal_out_channels),
                                        jnp.float32)
    out = cross_layer_interaction(spatial_output, temporal_output,
                                  w_packed, f_packed)
    out = jax.block_until_ready(out)
    ref = reference(spatial_output, temporal_output, params)
    assert out.shape == (batch, 1)
    # bf16 weights + activations -> ~1e-2 accuracy vs f32 reference
    assert jnp.allclose(out, ref, atol=3e-2, rtol=3e-2)

    # --- multi-tile case with a ragged final tile (boundary handling) ---
    batch2 = 1000
    s2 = jax.random.normal(k_s2, (batch2, spatial_out_channels), jnp.float32)
    t2 = jax.random.normal(k_t2, (batch2, temporal_out_channels), jnp.float32)
    out2 = cross_layer_interaction(s2, t2, w_packed, f_packed)
    out2 = jax.block_until_ready(out2)
    ref2 = reference(s2, t2, params)
    assert out2.shape == (batch2, 1)
    assert jnp.allclose(out2, ref2, atol=3e-2, rtol=3e-2)

    print("KERNEL_OK")
</pallas_src>

<mosaic_0001>
module attributes {stable_mosaic.version = 11 : i64} {
  func.func @kernel(%arg0: i32, %arg1: memref<128x16xf32, #tpu.memory_space<vmem>>, %arg2: memref<128x16xf32, #tpu.memory_space<vmem>>, %arg3: memref<96x128xbf16, #tpu.memory_space<vmem>>, %arg4: memref<72x128xf32, #tpu.memory_space<vmem>>, %arg5: memref<1x1x128xf32, #tpu.memory_space<vmem>>) attributes {dimension_semantics = [#tpu.dimension_semantics<parallel>], iteration_bounds = array<i64: 1>, scalar_prefetch = 0 : i64, scratch_operands = 0 : i64, tpu.core_type = #tpu.core_type<tc>, window_params = [{transform_indices = @transform_0, window_bounds = array<i64: 128, 16>}, {transform_indices = @transform_1, window_bounds = array<i64: 128, 16>}, {pipeline_mode = #tpu.pipeline_mode<synchronous>, transform_indices = @transform_2, window_bounds = array<i64: 96, 128>}, {pipeline_mode = #tpu.pipeline_mode<synchronous>, transform_indices = @transform_3, window_bounds = array<i64: 72, 128>}, {transform_indices = @transform_4, window_bounds = array<i64: 1, 1, 128>}]} {
    %c0 = arith.constant 0 : index
    %c0_0 = arith.constant 0 : index
    %0 = vector.load %arg1[%c0, %c0_0] : memref<128x16xf32, #tpu.memory_space<vmem>>, vector<128x16xf32>
    %c0_1 = arith.constant 0 : index
    %c0_2 = arith.constant 0 : index
    %1 = vector.load %arg2[%c0_1, %c0_2] : memref<128x16xf32, #tpu.memory_space<vmem>>, vector<128x16xf32>
    %2 = tpu.concatenate %0, %1 in 1 : vector<128x16xf32>, vector<128x16xf32> -> vector<128x32xf32>
    %3 = arith.truncf %2 : vector<128x32xf32> to vector<128x32xbf16>
    %c0_3 = arith.constant 0 : index
    %c0_4 = arith.constant 0 : index
    %4 = vector.load %arg3[%c0_3, %c0_4] : memref<96x128xbf16, #tpu.memory_space<vmem>>, vector<32x128xbf16>
    %c64 = arith.constant 64 : index
    %c0_5 = arith.constant 0 : index
    %5 = vector.load %arg4[%c64, %c0_5] : memref<72x128xf32, #tpu.memory_space<vmem>>, vector<1x128xf32>
    %cst = arith.constant dense<0.000000e+00> : vector<128x128xf32>
    %6 = tpu.matmul %3, %4, %cst {dimension_numbers = #tpu.dot_dimension_numbers<[1], [0], [0], [1], [0, 0, 1, 1], [], []>} : vector<128x32xbf16>, vector<32x128xbf16>, vector<128x128xf32> -> vector<128x128xf32>
    %7 = vector.broadcast %5 : vector<1x128xf32> to vector<128x128xf32>
    %8 = arith.addf %6, %7 : vector<128x128xf32>
    %cst_6 = arith.constant 0.000000e+00 : f32
    %9 = vector.broadcast %cst_6 : f32 to vector<128x128xf32>
    %10 = arith.maximumf %8, %9 : vector<128x128xf32>
    %11 = tpu.transpose %10, [1, 0] : vector<128x128xf32> -> vector<128x128xf32>
    %12 = arith.truncf %11 : vector<128x128xf32> to vector<128x128xbf16>
    %c32 = arith.constant 32 : index
    %c0_7 = arith.constant 0 : index
    %13 = vector.load %arg3[%c32, %c0_7] : memref<96x128xbf16, #tpu.memory_space<vmem>>, vector<64x128xbf16>
    %c0_8 = arith.constant 0 : index
    %c0_9 = arith.constant 0 : index
    %14 = vector.load %arg4[%c0_8, %c0_9] : memref<72x128xf32, #tpu.memory_space<vmem>>, vector<64x1xf32>
    %cst_10 = arith.constant dense<0.000000e+00> : vector<64x128xf32>
    %15 = tpu.matmul %13, %12, %cst_10 {dimension_numbers = #tpu.dot_dimension_numbers<[1], [0], [0], [1], [0, 0, 1, 1], [], []>} : vector<64x128xbf16>, vector<128x128xbf16>, vector<64x128xf32> -> vector<64x128xf32>
    %16 = vector.broadcast %14 : vector<64x1xf32> to vector<64x128xf32>
    %17 = arith.addf %15, %16 : vector<64x128xf32>
    %cst_11 = arith.constant 0.000000e+00 : f32
    %18 = vector.broadcast %cst_11 : f32 to vector<64x128xf32>
    %19 = arith.maximumf %17, %18 : vector<64x128xf32>
    %c0_12 = arith.constant 0 : index
    %c1 = arith.constant 1 : index
    %20 = vector.load %arg4[%c0_12, %c1] : memref<72x128xf32, #tpu.memory_space<vmem>>, vector<64x1xf32>
    %c0_13 = arith.constant 0 : index
    %c2 = arith.constant 2 : index
    %21 = vector.load %arg4[%c0_13, %c2] : memref<72x128xf32, #tpu.memory_space<vmem>>, vector<1x1xf32>
    %22 = vector.broadcast %20 : vector<64x1xf32> to vector<64x128xf32>
    %23 = arith.mulf %19, %22 : vector<64x128xf32>
    %cst_14 = arith.constant dense<0.000000e+00> : vector<128xf32>
    %24 = vector.multi_reduction <add>, %23, %cst_14 [0] : vector<64x128xf32> to vector<128xf32>
    %25 = vector.shape_cast %24 : vector<128xf32> to vector<1x128xf32>
    %26 = vector.broadcast %21 : vector<1x1xf32> to vector<1x128xf32>
    %27 = arith.addf %25, %26 : vector<1x128xf32>
    %28 = vector.shape_cast %27 : vector<1x128xf32> to vector<1x1x128xf32>
    %c0_15 = arith.constant 0 : index
    %c0_16 = arith.constant 0 : index
    %c0_17 = arith.constant 0 : index
    %29 = vector.load %arg5[%c0_15, %c0_16, %c0_17] : memref<1x1x128xf32, #tpu.memory_space<vmem>>, vector<1x1x128xf32>
    tpu.vector_store %arg5[%c0_15, %c0_16, %c0_17], %28 {strides = array<i32>} : memref<1x1x128xf32, #tpu.memory_space<vmem>>, vector<1x1x128xf32>,
    return
  }
  func.func @transform_0(%arg0: i32) -> (i32, i32) {
    %c0_i32 = arith.constant 0 : i32
    %c0_i32_0 = arith.constant 0 : i32
    return %arg0, %c0_i32 : i32, i32
  }
  func.func @transform_1(%arg0: i32) -> (i32, i32) {
    %c0_i32 = arith.constant 0 : i32
    %c0_i32_0 = arith.constant 0 : i32
    return %arg0, %c0_i32 : i32, i32
  }
  func.func @transform_2(%arg0: i32) -> (i32, i32) {
    %c0_i32 = arith.constant 0 : i32
    %c0_i32_0 = arith.constant 0 : i32
    %c0_i32_1 = arith.constant 0 : i32
    return %c0_i32, %c0_i32_0 : i32, i32
  }
  func.func @transform_3(%arg0: i32) -> (i32, i32) {
    %c0_i32 = arith.constant 0 : i32
    %c0_i32_0 = arith.constant 0 : i32
    %c0_i32_1 = arith.constant 0 : i32
    return %c0_i32, %c0_i32_0 : i32, i32
  }
  func.func @transform_4(%arg0: i32) -> (i32, i32, i32) {
    %c0_i32 = arith.constant 0 : i32
    %c0_i32_0 = arith.constant 0 : i32
    %c0_i32_1 = arith.constant 0 : i32
    return %arg0, %c0_i32, %c0_i32_0 : i32, i32, i32
  }
}

</mosaic_0001>

<llo_original>
// kernel: tpu_custom_call.1
$region0: #{tpu_custom_call.1}
  #allocation0 [shape = 'u32[]', space=smem, size = 0x4, offset = 0x4, fixed_abs, tag = 'smem constant byte address 0x4 - core index']
  #allocation1 [shape = 'u32[72,128]{1,0:T(1,128)}', space=vmem, size = 0x9000, scoped, tag = 'internal scratch']
  %s0 = inlined_call_operand.vmem [shape: f32[128,16], index: 0, kind: input, shape index: {}]
  %s1 = inlined_call_operand.vmem [shape: f32[128,16], index: 1, kind: input, shape index: {}]
  %s2 = inlined_call_operand.vmem [shape: bf16[96,128], index: 2, kind: input, shape index: {}]
  %s3 = inlined_call_operand.vmem [shape: f32[72,128], index: 3, kind: input, shape index: {}]
  %s4 = inlined_call_operand.hbm [shape: f32[1,1,128], index: 4, kind: output, shape index: {}]
  %s5 = sld [smem:[#allocation0]]
  $region26: #{tpu_custom_call.1} parent=0
    _
  %s7 = ssub.s32 1, %s5
  %s8 = scalar_select 0, %s7, %s5
  $region1: #{tpu_custom_call.1} parent=0
    #allocation2 [shape = 'u8[512]{0}', space=vmem, size = 0x400, scoped, tag = 'output window, operand 0, single buffered']
    #allocation3 [shape = 's32[1]{0}', space=sflag, size = 0x4, scoped, tag = 'scoped memory for tpu_custom_call.1']
    %9 = vsyncpa [#allocation3], 0
    // Predicated region
    $region2: #{tpu_custom_call.1} parent=1 // pred_check
      _
    $region3: #{tpu_custom_call.1} parent=1 // pred_check_branch
      %11 = sbr.rel (0) target = $region5
    $region4: #{tpu_custom_call.1} parent=1 // pred_region
      _
    $region5: #{tpu_custom_call.1} parent=1 // pred_fallthru
      _
    // Predicated region
    $region6: #{tpu_custom_call.1} parent=1 // pred_check
      _
    $region7: #{tpu_custom_call.1} parent=1 // pred_check_branch
      %13 = sbr.rel (0) target = $region9
    $region8: #{tpu_custom_call.1} parent=1 // pred_region
      _
    $region9: #{tpu_custom_call.1} parent=1 // pred_fallthru
      _
    // Predicated region
    $region10: #{tpu_custom_call.1} parent=1 // pred_check
      _
    $region11: #{tpu_custom_call.1} parent=1 // pred_check_branch
      %15 = sbr.rel (0) target = $region13
    $region12: #{tpu_custom_call.1} parent=1 // pred_region
      _
    $region13: #{tpu_custom_call.1} parent=1 // pred_fallthru
      _
    // Predicated region
    $region14: #{tpu_custom_call.1} parent=1 // pred_check
      _
    $region15: #{tpu_custom_call.1} parent=1 // pred_check_branch
      %17 = sbr.rel (0) target = $region17
    $region16: #{tpu_custom_call.1} parent=1 // pred_region
      _
    $region17: #{tpu_custom_call.1} parent=1 // pred_fallthru
      _
    %v19 = vld [vmem:[%s0] sm:$0xff]
    %v20 = vld [vmem:[%s0 + $0x8] sm:$0xff]
    %v21 = vld [vmem:[%s0 + $0x10] sm:$0xff]
    %v22 = vld [vmem:[%s0 + $0x18] sm:$0xff]
    %v23 = vld [vmem:[%s0 + $0x20] sm:$0xff]
    %v24 = vld [vmem:[%s0 + $0x28] sm:$0xff]
    %v25 = vld [vmem:[%s0 + $0x30] sm:$0xff]
    %v26 = vld [vmem:[%s0 + $0x38] sm:$0xff]
    %v27 = vld [vmem:[%s0 + $0x40] sm:$0xff]
    %v28 = vld [vmem:[%s0 + $0x48] sm:$0xff]
    %v29 = vld [vmem:[%s0 + $0x50] sm:$0xff]
    %v30 = vld [vmem:[%s0 + $0x58] sm:$0xff]
    %v31 = vld [vmem:[%s0 + $0x60] sm:$0xff]
    %v32 = vld [vmem:[%s0 + $0x68] sm:$0xff]
    %v33 = vld [vmem:[%s0 + $0x70] sm:$0xff]
    %v34 = vld [vmem:[%s0 + $0x78] sm:$0xff]
    %v35 = vld [vmem:[%s1] sm:$0xff]
    %v36 = vld [vmem:[%s1 + $0x8] sm:$0xff]
    %v37 = vld [vmem:[%s1 + $0x10] sm:$0xff]
    %v38 = vld [vmem:[%s1 + $0x18] sm:$0xff]
    %v39 = vld [vmem:[%s1 + $0x20] sm:$0xff]
    %v40 = vld [vmem:[%s1 + $0x28] sm:$0xff]
    %v41 = vld [vmem:[%s1 + $0x30] sm:$0xff]
    %v42 = vld [vmem:[%s1 + $0x38] sm:$0xff]
    %v43 = vld [vmem:[%s1 + $0x40] sm:$0xff]
    %v44 = vld [vmem:[%s1 + $0x48] sm:$0xff]
    %v45 = vld [vmem:[%s1 + $0x50] sm:$0xff]
    %v46 = vld [vmem:[%s1 + $0x58] sm:$0xff]
    %v47 = vld [vmem:[%s1 + $0x60] sm:$0xff]
    %v48 = vld [vmem:[%s1 + $0x68] sm:$0xff]
    %v49 = vld [vmem:[%s1 + $0x70] sm:$0xff]
    %v50 = vld [vmem:[%s1 + $0x78] sm:$0xff]
    %67 = vrot.lane.b32.xlu0 %v35, 16
    %v68 = vpop.permute.xlu0 %67
    %69 = vrot.lane.b32.xlu0 %v36, 16
    %v70 = vpop.permute.xlu0 %69
    %71 = vrot.lane.b32.xlu0 %v37, 16
    %v72 = vpop.permute.xlu0 %71
    %73 = vrot.lane.b32.xlu0 %v38, 16
    %v74 = vpop.permute.xlu0 %73
    %75 = vrot.lane.b32.xlu0 %v39, 16
    %v76 = vpop.permute.xlu0 %75
    %77 = vrot.lane.b32.xlu0 %v40, 16
    %v78 = vpop.permute.xlu0 %77
    %79 = vrot.lane.b32.xlu0 %v41, 16
    %v80 = vpop.permute.xlu0 %79
    %81 = vrot.lane.b32.xlu0 %v42, 16
    %v82 = vpop.permute.xlu0 %81
    %83 = vrot.lane.b32.xlu0 %v43, 16
    %v84 = vpop.permute.xlu0 %83
    %85 = vrot.lane.b32.xlu0 %v44, 16
    %v86 = vpop.permute.xlu0 %85
    %87 = vrot.lane.b32.xlu0 %v45, 16
    %v88 = vpop.permute.xlu0 %87
    %89 = vrot.lane.b32.xlu0 %v46, 16
    %v90 = vpop.permute.xlu0 %89
    %91 = vrot.lane.b32.xlu0 %v47, 16
    %v92 = vpop.permute.xlu0 %91
    %93 = vrot.lane.b32.xlu0 %v48, 16
    %v94 = vpop.permute.xlu0 %93
    %95 = vrot.lane.b32.xlu0 %v49, 16
    %v96 = vpop.permute.xlu0 %95
    %97 = vrot.lane.b32.xlu0 %v50, 16
    %v98 = vpop.permute.xlu0 %97
    %vm115 = vcmask 130048
    %v116 = vsel %vm115, %v19, %v68
    %v117 = vsel %vm115, %v20, %v70
    %v118 = vsel %vm115, %v21, %v72
    %v119 = vsel %vm115, %v22, %v74
    %v120 = vsel %vm115, %v23, %v76
    %v121 = vsel %vm115, %v24, %v78
    %v122 = vsel %vm115, %v25, %v80
    %v123 = vsel %vm115, %v26, %v82
    %v124 = vsel %vm115, %v27, %v84
    %v125 = vsel %vm115, %v28, %v86
    %v126 = vsel %vm115, %v29, %v88
    %v127 = vsel %vm115, %v30, %v90
    %v128 = vsel %vm115, %v31, %v92
    %v129 = vsel %vm115, %v32, %v94
    %v130 = vsel %vm115, %v33, %v96
    %v131 = vsel %vm115, %v34, %v98
    %v132 = vpack.c.bf16 %v117, %v116
    %v133 = vpack.c.bf16 %v119, %v118
    %v134 = vpack.c.bf16 %v121, %v120
    %v135 = vpack.c.bf16 %v123, %v122
    %v136 = vpack.c.bf16 %v125, %v124
    %v137 = vpack.c.bf16 %v127, %v126
    %v138 = vpack.c.bf16 %v129, %v128
    %v139 = vpack.c.bf16 %v131, %v130
    %v140 = vld [vmem:[%s2] sm:$0xf]
    %v141 = vld [vmem:[%s2 + $0x4] sm:$0xf]
    %v142 = vld [vmem:[%s2 + $0x8] sm:$0xf]
    %v143 = vld [vmem:[%s2 + $0xc] sm:$0xf]
    %v144 = vld [vmem:[%s3 + $0x40] sm:$0x1]
    %v145 = vperm.slane %v144, 0
    %v150 = vunpack.c.l.b16 %v140
    %v151 = vunpack.c.l.b16 %v141
    %v152 = vunpack.c.l.b16 %v142
    %v153 = vunpack.c.l.b16 %v143
    %v154 = vpack.c.b16 %v151, %v150
    %v155 = vpack.c.b16 %v153, %v152
    %vm158 = vcmask 261120
    %v160 = vsel %vm158, %v132, 0
    %v163 = vsel %vm158, %v133, 0
    %v166 = vsel %vm158, %v134, 0
    %v169 = vsel %vm158, %v135, 0
    %v172 = vsel %vm158, %v136, 0
    %v175 = vsel %vm158, %v137, 0
    %v178 = vsel %vm158, %v138, 0
    %v181 = vsel %vm158, %v139, 0
    %183 = vmatpush.bf16.msra.mxu0 0
    %184 = vmatpush.bf16.msra.mxu0 0
    %185 = vmatpush.bf16.msra.mxu0 0
    %186 = vmatpush.bf16.msra.mxu0 0
    %187 = vmatpush.bf16.msra.mxu0 0
    %188 = vmatpush.bf16.msra.mxu0 0
    %189 = vmatpush.bf16.msra.mxu0 %v155
    %190 = vmatpush.bf16.msra.mxu0 %v154
    %191 = vmatmul.bf16.gmra.mxu0 %v160
    %v192 = vpop.f32.mrf.mxu0
    %v193 = vadd.f32 %v145, %v192
    %v194 = vpop.f32.mrf.mxu0
    %v195 = vadd.f32 %v145, %v194
    %196 = vmatmul.bf16.gmra.mxu0 %v163
    %v197 = vpop.f32.mrf.mxu0
    %v198 = vadd.f32 %v145, %v197
    %v199 = vpop.f32.mrf.mxu0
    %v200 = vadd.f32 %v145, %v199
    %201 = vmatmul.bf16.gmra.mxu0 %v166
    %v202 = vpop.f32.mrf.mxu0
    %v203 = vadd.f32 %v145, %v202
    %v204 = vpop.f32.mrf.mxu0
    %v205 = vadd.f32 %v145, %v204
    %206 = vmatmul.bf16.gmra.mxu0 %v169
    %v207 = vpop.f32.mrf.mxu0
    %v208 = vadd.f32 %v145, %v207
    %v209 = vpop.f32.mrf.mxu0
    %v210 = vadd.f32 %v145, %v209
    %211 = vmatmul.bf16.gmra.mxu0 %v172
    %v212 = vpop.f32.mrf.mxu0
    %v213 = vadd.f32 %v145, %v212
    %v214 = vpop.f32.mrf.mxu0
    %v215 = vadd.f32 %v145, %v214
    %216 = vmatmul.bf16.gmra.mxu0 %v175
    %v217 = vpop.f32.mrf.mxu0
    %v218 = vadd.f32 %v145, %v217
    %v219 = vpop.f32.mrf.mxu0
    %v220 = vadd.f32 %v145, %v219
    %221 = vmatmul.bf16.gmra.mxu0 %v178
    %v222 = vpop.f32.mrf.mxu0
    %v223 = vadd.f32 %v145, %v222
    %v224 = vpop.f32.mrf.mxu0
    %v225 = vadd.f32 %v145, %v224
    %226 = vmatmul.bf16.gmra.mxu0 %v181
    %v227 = vpop.f32.mrf.mxu0
    %v228 = vadd.f32 %v145, %v227
    %v229 = vpop.f32.mrf.mxu0
    %v230 = vadd.f32 %v145, %v229
    %231 = vdwg.mxu0
    %v232 = vmax.f32 %v193, 0.0
    %v233 = vmax.f32 %v195, 0.0
    %v234 = vmax.f32 %v198, 0.0
    %v235 = vmax.f32 %v200, 0.0
    %v236 = vmax.f32 %v203, 0.0
    %v237 = vmax.f32 %v205, 0.0
    %v238 = vmax.f32 %v208, 0.0
    %v239 = vmax.f32 %v210, 0.0
    %v240 = vmax.f32 %v213, 0.0
    %v241 = vmax.f32 %v215, 0.0
    %v242 = vmax.f32 %v218, 0.0
    %v243 = vmax.f32 %v220, 0.0
    %v244 = vmax.f32 %v223, 0.0
    %v245 = vmax.f32 %v225, 0.0
    %v246 = vmax.f32 %v228, 0.0
    %v247 = vmax.f32 %v230, 0.0
    %248 = vxpose.xlu0.b32.start [1/16] %v232, 128
    %249 = vxpose.xlu0.b32.cont [2/16] %v233, 128
    %250 = vxpose.xlu0.b32.cont [3/16] %v234, 128
    %251 = vxpose.xlu0.b32.cont [4/16] %v235, 128
    %252 = vxpose.xlu0.b32.cont [5/16] %v236, 128
    %253 = vxpose.xlu0.b32.cont [6/16] %v237, 128
    %254 = vxpose.xlu0.b32.cont [7/16] %v238, 128
    %255 = vxpose.xlu0.b32.cont [8/16] %v239, 128
    %256 = vxpose.xlu0.b32.cont [9/16] %v240, 128
    %257 = vxpose.xlu0.b32.cont [10/16] %v241, 128
    %258 = vxpose.xlu0.b32.cont [11/16] %v242, 128
    %259 = vxpose.xlu0.b32.cont [12/16] %v243, 128
    %260 = vxpose.xlu0.b32.cont [13/16] %v244, 128
    %261 = vxpose.xlu0.b32.cont [14/16] %v245, 128
    %262 = vxpose.xlu0.b32.cont [15/16] %v246, 128
    %263 = vxpose.xlu0.b32.end [16/16] %v247, 128
    %v264 = vpop.trf.xlu0
    %v265 = vpop.trf.xlu0
    %v266 = vpop.trf.xlu0
    %v267 = vpop.trf.xlu0
    %v268 = vpop.trf.xlu0
    %v269 = vpop.trf.xlu0
    %v270 = vpop.trf.xlu0
    %v271 = vpop.trf.xlu0
    %v272 = vpop.trf.xlu0
    %v273 = vpop.trf.xlu0
    %v274 = vpop.trf.xlu0
    %v275 = vpop.trf.xlu0
    %v276 = vpop.trf.xlu0
    %v277 = vpop.trf.xlu0
    %v278 = vpop.trf.xlu0
    %v279 = vpop.trf.xlu0
    %v280 = vpack.c.bf16 %v265, %v264
    %v281 = vpack.c.bf16 %v267, %v266
    %v282 = vpack.c.bf16 %v269, %v268
    %v283 = vpack.c.bf16 %v271, %v270
    %v284 = vpack.c.bf16 %v273, %v272
    %v285 = vpack.c.bf16 %v275, %v274
    %v286 = vpack.c.bf16 %v277, %v276
    %v287 = vpack.c.bf16 %v279, %v278
    %v288 = vld [vmem:[%s2 + $0x10] sm:$0xf]
    %v289 = vld [vmem:[%s2 + $0x14] sm:$0xf]
    %v290 = vld [vmem:[%s2 + $0x18] sm:$0xf]
    %v291 = vld [vmem:[%s2 + $0x1c] sm:$0xf]
    %v292 = vld [vmem:[%s2 + $0x20] sm:$0xf]
    %v293 = vld [vmem:[%s2 + $0x24] sm:$0xf]
    %v294 = vld [vmem:[%s2 + $0x28] sm:$0xf]
    %v295 = vld [vmem:[%s2 + $0x2c] sm:$0xf]
    %v296 = vld [vmem:[%s3] sm:$0xff]
    %v297 = vld [vmem:[%s3 + $0x8] sm:$0xff]
    %v298 = vld [vmem:[%s3 + $0x10] sm:$0xff]
    %v299 = vld [vmem:[%s3 + $0x18] sm:$0xff]
    %v300 = vld [vmem:[%s3 + $0x20] sm:$0xff]
    %v301 = vld [vmem:[%s3 + $0x28] sm:$0xff]
    %v302 = vld [vmem:[%s3 + $0x30] sm:$0xff]
    %v303 = vld [vmem:[%s3 + $0x38] sm:$0xff]
    %305 = vset.pattern.permute.xlu0 0
    %306 = vperm.xlu0 %305, %v296
    %v307 = vpop.permute.xlu0 %306
    %310 = vset.pattern.permute.xlu0 0
    %311 = vperm.xlu0 %310, %v297
    %v312 = vpop.permute.xlu0 %311
    %315 = vset.pattern.permute.xlu0 0
    %316 = vperm.xlu0 %315, %v298
    %v317 = vpop.permute.xlu0 %316
    %320 = vset.pattern.permute.xlu0 0
    %321 = vperm.xlu0 %320, %v299
    %v322 = vpop.permute.xlu0 %321
    %325 = vset.pattern.permute.xlu0 0
    %326 = vperm.xlu0 %325, %v300
    %v327 = vpop.permute.xlu0 %326
    %330 = vset.pattern.permute.xlu0 0
    %331 = vperm.xlu0 %330, %v301
    %v332 = vpop.permute.xlu0 %331
    %335 = vset.pattern.permute.xlu0 0
    %336 = vperm.xlu0 %335, %v302
    %v337 = vpop.permute.xlu0 %336
    %340 = vset.pattern.permute.xlu0 0
    %341 = vperm.xlu0 %340, %v303
    %v342 = vpop.permute.xlu0 %341
    %v352 = vunpack.c.l.b16 %v288
    %v353 = vunpack.c.l.b16 %v289
    %v354 = vunpack.c.l.b16 %v290
    %v355 = vunpack.c.l.b16 %v291
    %v356 = vunpack.c.l.b16 %v292
    %v357 = vunpack.c.l.b16 %v293
    %v358 = vunpack.c.l.b16 %v294
    %v359 = vunpack.c.l.b16 %v295
    %v360 = vpack.c.b16 %v353, %v352
    %v361 = vpack.c.b16 %v355, %v354
    %v362 = vpack.c.b16 %v357, %v356
    %v363 = vpack.c.b16 %v359, %v358
    %368 = vmatpush.bf16.msra.mxu0 %v287
    %369 = vmatpush.bf16.msra.mxu0 %v286
    %370 = vmatpush.bf16.msra.mxu0 %v285
    %371 = vmatpush.bf16.msra.mxu0 %v284
    %372 = vmatpush.bf16.msra.mxu0 %v283
    %373 = vmatpush.bf16.msra.mxu0 %v282
    %374 = vmatpush.bf16.msra.mxu0 %v281
    %375 = vmatpush.bf16.msra.mxu0 %v280
    %376 = vmatmul.bf16.gmra.mxu0 %v360
    %v377 = vpop.f32.mrf.mxu0
    %v378 = vadd.f32 %v307, %v377
    %v379 = vpop.f32.mrf.mxu0
    %v380 = vadd.f32 %v312, %v379
    %381 = vmatmul.bf16.gmra.mxu0 %v361
    %v382 = vpop.f32.mrf.mxu0
    %v383 = vadd.f32 %v317, %v382
    %v384 = vpop.f32.mrf.mxu0
    %v385 = vadd.f32 %v322, %v384
    %386 = vmatmul.bf16.gmra.mxu0 %v362
    %v387 = vpop.f32.mrf.mxu0
    %v388 = vadd.f32 %v327, %v387
    %v389 = vpop.f32.mrf.mxu0
    %v390 = vadd.f32 %v332, %v389
    %391 = vmatmul.bf16.gmra.mxu0 %v363
    %v392 = vpop.f32.mrf.mxu0
    %v393 = vadd.f32 %v337, %v392
    %v394 = vpop.f32.mrf.mxu0
    %v395 = vadd.f32 %v342, %v394
    %396 = vdwg.mxu0
    %v397 = vmax.f32 %v378, 0.0
    %v398 = vmax.f32 %v380, 0.0
    %v399 = vmax.f32 %v383, 0.0
    %v400 = vmax.f32 %v385, 0.0
    %v401 = vmax.f32 %v388, 0.0
    %v402 = vmax.f32 %v390, 0.0
    %v403 = vmax.f32 %v393, 0.0
    %v404 = vmax.f32 %v395, 0.0
    %v405 = vld [vmem:[%s3] sm:$0x1]
    %406 = vset.pattern.permute.xlu0 1
    %407 = vperm.xlu0 %406, %v296
    %v408 = vpop.permute.xlu0 %407
    %410 = vset.pattern.permute.xlu0 1
    %411 = vperm.xlu0 %410, %v297
    %v412 = vpop.permute.xlu0 %411
    %414 = vset.pattern.permute.xlu0 1
    %415 = vperm.xlu0 %414, %v298
    %v416 = vpop.permute.xlu0 %415
    %418 = vset.pattern.permute.xlu0 1
    %419 = vperm.xlu0 %418, %v299
    %v420 = vpop.permute.xlu0 %419
    %422 = vset.pattern.permute.xlu0 1
    %423 = vperm.xlu0 %422, %v300
    %v424 = vpop.permute.xlu0 %423
    %426 = vset.pattern.permute.xlu0 1
    %427 = vperm.xlu0 %426, %v301
    %v428 = vpop.permute.xlu0 %427
    %430 = vset.pattern.permute.xlu0 1
    %431 = vperm.xlu0 %430, %v302
    %v432 = vpop.permute.xlu0 %431
    %434 = vset.pattern.permute.xlu0 1
    %435 = vperm.xlu0 %434, %v303
    %v436 = vpop.permute.xlu0 %435
    %v438 = vmul.f32 %v397, %v408
    %v439 = vmul.f32 %v398, %v412
    %v440 = vmul.f32 %v399, %v416
    %v441 = vmul.f32 %v400, %v420
    %v442 = vmul.f32 %v401, %v424
    %v443 = vmul.f32 %v402, %v428
    %v444 = vmul.f32 %v403, %v432
    %v445 = vmul.f32 %v404, %v436
    %v446 = vadd.f32 %v438, %v439
    %v447 = vadd.f32 %v446, %v440
    %v448 = vadd.f32 %v447, %v441
    %v449 = vadd.f32 %v448, %v442
    %v450 = vadd.f32 %v449, %v443
    %v451 = vadd.f32 %v450, %v444
    %v452 = vadd.f32 %v451, %v445
    %v453 = vrot.slane %v452, 4
    %v454 = vadd.f32 %v452, %v453
    %v455 = vrot.slane %v454, 2
    %v456 = vadd.f32 %v454, %v455
    %v457 = vrot.slane %v456, 1
    %v458 = vadd.f32 %v456, %v457
    %460 = vset.pattern.permute.xlu0 2
    %461 = vperm.xlu0 %460, %v405
    %v462 = vpop.permute.xlu0 %461
    %v464 = vadd.f32 %v458, %v462
    %465 = vst [vmem:[#allocation2] sm:$0x1] %v464
    // Predicated region
    $region18: #{tpu_custom_call.1} parent=1 // pred_check
      _
    $region19: #{tpu_custom_call.1} parent=1 // pred_check_branch
      %467 = sbr.rel (0) target = $region21
    $region20: #{tpu_custom_call.1} parent=1 // pred_region
      %469 = vsyncadd [#allocation3], 0
      %s471 = sshll.u32 [#allocation2], 4
      %s472 = int_to_ptr.vmem [resolvable:$true] %s471
      %s473 = sshll.u32 %s4, 4
      %s474 = int_to_ptr.hbm [resolvable:$true] %s473
      %476 = dma.vmem_to_hbm [thread:$0]  %s472, 16, %s474, [#allocation3]
    $region21: #{tpu_custom_call.1} parent=1 // pred_fallthru
      _
    // Predicated region
    $region22: #{tpu_custom_call.1} parent=1 // pred_check
      _
    $region23: #{tpu_custom_call.1} parent=1 // pred_check_branch
      %478 = sbr.rel (0) target = $region25
    $region24: #{tpu_custom_call.1} parent=1 // pred_region
      %480 = dma.done [#allocation3], 16
    $region25: #{tpu_custom_call.1} parent=1 // pred_fallthru
      _
    %481 = vsyncpa [#allocation3], 1

</llo_original>
